<compile_context>
chip_gen: v6e
topology: v6e:2x2x1
jax: 0.10.0
libtpu: 0.0.40
codegen_flags: <defaults>
</compile_context>

<pallas_src>
import functools

import numpy as np
import jax
import jax.numpy as jnp
from jax.experimental import pallas as pl
from jax.experimental.pallas import tpu as pltpu


def _criterion_kernel(logits_ref,  # VMEM [TB, Q, K]   bf16/f32 pred_logits
                      cls_ref,     # VMEM [TB, Q, 1]   i32 target class per query (K-1 = no-object)
                      box_ref,     # VMEM [TB, 8, QP]  f32 matched boxes, lane-major pairs
                                   #      sublanes = {scx, scy, tcx, tcy, sw, sh, tw, th}
                      mask_ref,    # VMEM [TB, 1, QP]  f32 pair validity mask
                      valid_ref,   # VMEM [TB, 1, 1]   f32 image validity (0 for batch padding)
                      out_ref,     # VMEM [1, 1, 128]  f32 partials (lane-dense):
                                   #      [ce_num, ce_den, |card err|, bbox_sum, giou_sum, 0...]
                      *, eos_coef):
    TB, Q, K = logits_ref.shape
    logits = logits_ref[...].astype(jnp.float32)                    # f32 compute
    tgt = cls_ref[...]                                               # (TB,Q,1) i32
    valid = valid_ref[...]                                           # (TB,1,1) f32

    # ---------------- loss_labels: weighted NLL partials ---------------------------
    m = jnp.max(logits, axis=-1, keepdims=True)                      # (TB,Q,1)
    z = logits - m
    lse = m + jnp.log(jnp.sum(jnp.exp(z), axis=-1, keepdims=True))   # full logsumexp
    cls_iota = jax.lax.broadcasted_iota(jnp.int32, (TB, Q, K), 2)    # shared iota
    onehot = cls_iota == tgt
    logit_t = jnp.sum(jnp.where(onehot, logits, 0.0), axis=-1, keepdims=True)
    nll = lse - logit_t                                              # (TB,Q,1)
    # empty_weight: 1 everywhere except eos_coef at no-object; zero out padded images.
    w_t = jnp.where(tgt == K - 1, eos_coef, 1.0) * valid             # (TB,Q,1)
    ce_num = jnp.sum(w_t * nll)
    ce_den = jnp.sum(w_t)

    # ---------------- loss_cardinality (reuse z; first-occurrence tie semantics) ---
    # argmax != K-1  <=>  some foreground class attains the max  <=>  z == 0 there.
    fg_hits_max = jnp.where((cls_iota < K - 1) & (z == 0.0), 1.0, 0.0)
    non_empty = jnp.max(fg_hits_max, axis=-1, keepdims=True)         # (TB,Q,1)
    card_pred = jnp.sum(non_empty, axis=1, keepdims=True)            # (TB,1,1)
    msk = mask_ref[...]                                              # (TB,1,QP)
    n_tgt = jnp.sum(msk, axis=2, keepdims=True)                      # (TB,1,1) #matched pairs
    card_abs = jnp.sum(jnp.abs(card_pred - n_tgt) * valid)

    # ---------------- loss_boxes: L1 + GIoU on the packed (8, QP) slab -------------
    boxes = box_ref[...]                                             # (TB,8,QP)
    centers = boxes[:, 0:4, :]                                       # [scx, scy, tcx, tcy]
    sizes = boxes[:, 4:8, :]                                         # [sw,  sh,  tw,  th ]

    l1 = (jnp.abs(centers[:, 0:2] - centers[:, 2:4])
          + jnp.abs(sizes[:, 0:2] - sizes[:, 2:4]))                  # (TB,2,QP)
    bbox_sum = jnp.sum(l1 * msk)

    x0y0 = centers - 0.5 * sizes                                     # [sx0, sy0, tx0, ty0]
    x1y1 = centers + 0.5 * sizes                                     # [sx1, sy1, tx1, ty1]
    wh_st = x1y1 - x0y0                                              # widths/heights (src,tgt)
    area_s = wh_st[:, 0:1] * wh_st[:, 1:2]
    area_t = wh_st[:, 2:3] * wh_st[:, 3:4]
    lt = jnp.maximum(x0y0[:, 0:2], x0y0[:, 2:4])                     # (TB,2,QP)
    rb = jnp.minimum(x1y1[:, 0:2], x1y1[:, 2:4])
    wh_i = jnp.maximum(rb - lt, 0.0)
    inter = wh_i[:, 0:1] * wh_i[:, 1:2]
    union = area_s + area_t - inter
    iou = inter / union                                              # NaN only for degenerate real boxes (as in torchvision)
    elt = jnp.minimum(x0y0[:, 0:2], x0y0[:, 2:4])
    erb = jnp.maximum(x1y1[:, 0:2], x1y1[:, 2:4])
    wh_c = jnp.maximum(erb - elt, 0.0)
    area_c = wh_c[:, 0:1] * wh_c[:, 1:2]
    giou = iou - (area_c - union) / area_c                           # (TB,1,QP)
    giou_sum = jnp.sum(jnp.where(msk > 0.0, 1.0 - giou, 0.0))

    # ---------------- emit lane-dense partials for this batch block ----------------
    lane = jax.lax.broadcasted_iota(jnp.int32, out_ref.shape, 2)     # (1,1,128)
    vals = (jnp.where(lane == 0, ce_num, 0.0)
            + jnp.where(lane == 1, ce_den, 0.0)
            + jnp.where(lane == 2, card_abs, 0.0)
            + jnp.where(lane == 3, bbox_sum, 0.0)
            + jnp.where(lane == 4, giou_sum, 0.0))
    out_ref[...] = vals


class SetCriterionPallas:
    """JAX/Pallas port of SetCriterion.forward for losses = ['labels','cardinality','boxes']."""

    def __init__(self, num_classes, eos_coef, logits_dtype=jnp.bfloat16):
        self.num_classes = num_classes
        self.eos_coef = float(eos_coef)
        self.logits_dtype = logits_dtype
        self._cache = {}

    # identity matcher (matcher is a constructor-injected dependency in the original)
    # TODO(synk): plug a real Hungarian matcher (scipy linear_sum_assignment).
    def _matcher(self, outputs, targets):
        return [(np.arange(len(t['labels']), dtype=np.int64),
                 np.arange(len(t['labels']), dtype=np.int64)) for t in targets]

    def _choose_tb(self, B, Q, K, QP):
        # Padded per-image block footprint (VMEM tiles are (8,128)).
        qpad = ((Q + 7) // 8) * 8
        kpad = ((K + 127) // 128) * 128
        itemsize = jnp.dtype(self.logits_dtype).itemsize
        per_img_in = (qpad * kpad * itemsize        # logits block
                      + qpad * 128 * 4              # target classes (last-dim-1 pads to 128 lanes)
                      + 8 * QP * 4                  # packed boxes (8, QP)
                      + 8 * QP * 4                  # pair mask (1 sublane pads to 8)
                      + 8 * 128 * 4)                # image-valid flag
        per_img_tmp = 6 * qpad * kpad * 4 + 14 * 8 * QP * 4   # f32 label/box temporaries
        per_img = 2 * per_img_in + per_img_tmp                 # 2x input double-buffering
        budget = 24 << 20                                      # safe on v7x (64 MiB physical VMEM)
        tb_vmem = max(1, budget // max(per_img, 1))
        tb_par = max(1, (B + 1) // 2)    # keep >=2 grid steps so v7x dual-TC can split the grid
        return int(min(B, tb_vmem, tb_par))

    def _build(self, B, Q, K, QP):
        key = (B, Q, K, QP, str(jnp.dtype(self.logits_dtype)))
        if key in self._cache:
            return self._cache[key]

        TB = self._choose_tb(B, Q, K, QP)
        G = -(-B // TB)
        B_pad = G * TB

        kernel = functools.partial(_criterion_kernel, eos_coef=self.eos_coef)

        qpad = ((Q + 7) // 8) * 8
        kpad = ((K + 127) // 128) * 128
        itemsize = jnp.dtype(self.logits_dtype).itemsize
        per_step = TB * (2 * (qpad * kpad * itemsize + qpad * 128 * 4 + 16 * QP * 4 + 8 * 128 * 4)
                         + 6 * qpad * kpad * 4 + 14 * 8 * QP * 4) + 8 * 128 * 4
        vmem_limit = int(min(32 << 20, max(8 << 20, 2 * per_step)))

        call = pl.pallas_call(
            kernel,
            grid=(G,),
            in_specs=[
                pl.BlockSpec((TB, Q, K), lambda g: (g, 0, 0)),
                # TODO(synk): move target classes / match indices to scalar prefetch (SMEM) to
                # avoid the (Q,1)->(Qpad,128) VMEM padding once TB grows large.
                pl.BlockSpec((TB, Q, 1), lambda g: (g, 0, 0)),
                pl.BlockSpec((TB, 8, QP), lambda g: (g, 0, 0)),
                pl.BlockSpec((TB, 1, QP), lambda g: (g, 0, 0)),
                pl.BlockSpec((TB, 1, 1), lambda g: (g, 0, 0)),
            ],
            out_specs=pl.BlockSpec((1, 1, 128), lambda g: (g, 0, 0)),
            out_shape=jax.ShapeDtypeStruct((G, 1, 128), jnp.float32),
            compiler_params=pltpu.CompilerParams(
                dimension_semantics=("parallel",),
                vmem_limit_bytes=vmem_limit),
        )

        logits_dtype = self.logits_dtype

        @jax.jit
        def run(pred_logits, pred_boxes, cls, src_idx, tgt_boxes_t, pair_mask, img_valid, num_boxes):
            pad_b = B_pad - B
            logits = jnp.pad(pred_logits.astype(logits_dtype), ((0, pad_b), (0, 0), (0, 0)))
            boxes = jnp.pad(pred_boxes.astype(jnp.float32), ((0, pad_b), (0, 0), (0, 0)))
            # On-device gather of matched predicted boxes (no host D2H of pred_boxes).
            idx = jnp.broadcast_to(src_idx[..., None], (B_pad, QP, 4))
            src_g = jnp.take_along_axis(boxes, idx, axis=1)           # (B_pad, QP, 4) cxcywh
            src_t = jnp.transpose(src_g, (0, 2, 1))                   # (B_pad, 4, QP)
            packed = jnp.concatenate(                                 # sublanes {scx,scy,tcx,tcy,sw,sh,tw,th}
                [src_t[:, 0:2], tgt_boxes_t[:, 0:2], src_t[:, 2:4], tgt_boxes_t[:, 2:4]],
                axis=1)                                               # (B_pad, 8, QP)

            parts = jnp.sum(call(logits, cls, packed, pair_mask, img_valid)[:, 0, :], axis=0)
            loss_ce = parts[0] / parts[1]
            card_err = parts[2] / B
            loss_bbox = parts[3] / num_boxes
            loss_giou = parts[4] / num_boxes
            return {'loss_ce': loss_ce, 'cardinality_error': card_err,
                    'loss_bbox': loss_bbox, 'loss_giou': loss_giou}

        info = run
        self._cache[key] = info
        return info

    def __call__(self, outputs, targets):
        pred_logits = jnp.asarray(outputs['pred_logits'])
        pred_boxes = jnp.asarray(outputs['pred_boxes'])   # stays on device
        B, Q, K = pred_logits.shape
        assert K == self.num_classes + 1

        indices = self._matcher(outputs, targets)

        QP = ((max(Q, 1) + 127) // 128) * 128             # lane-padded pair count
        TB = self._choose_tb(B, Q, K, QP)
        G = -(-B // TB)
        B_pad = G * TB
        run = self._build(B, Q, K, QP)

        # Host packing of the small matcher/target metadata only.
        # TODO(synk): pass match indices via PrefetchScalarGridSpec and gather pred_boxes in-kernel.
        target_classes = np.full((B_pad, Q, 1), self.num_classes, np.int32)
        src_idx = np.zeros((B_pad, QP), np.int32)
        pad_box = np.array([0.5, 0.5, 0.25, 0.25], np.float32).reshape(1, 4, 1)
        tgt_boxes_t = np.broadcast_to(pad_box, (B_pad, 4, QP)).copy()     # safe pad boxes (positive area)
        pair_mask = np.zeros((B_pad, 1, QP), np.float32)
        img_valid = np.zeros((B_pad, 1, 1), np.float32)
        img_valid[:B] = 1.0
        for b, (t, (src, tgt)) in enumerate(zip(targets, indices)):
            src = np.asarray(src)
            tgt = np.asarray(tgt)
            n = len(src)
            if n:
                labels = np.asarray(t['labels'])
                boxes = np.asarray(t['boxes'], np.float32)
                target_classes[b, src, 0] = labels[tgt]
                src_idx[b, :n] = src
                tgt_boxes_t[b, :, :n] = boxes[tgt].T
                pair_mask[b, 0, :n] = 1.0
        num_boxes = max(float(sum(len(t['labels']) for t in targets)), 1.0)  # world_size == 1

        return run(pred_logits, pred_boxes,
                   jnp.asarray(target_classes), jnp.asarray(src_idx),
                   jnp.asarray(tgt_boxes_t), jnp.asarray(pair_mask),
                   jnp.asarray(img_valid), jnp.float32(num_boxes))


def _reference_numpy(pred_logits, pred_boxes, targets, num_classes, eos_coef):
    """Pure numpy reference mirroring SetCriterion semantics (identity matcher)."""
    pred_logits = np.asarray(pred_logits, np.float64)
    pred_boxes = np.asarray(pred_boxes, np.float64)
    B, Q, K = pred_logits.shape
    ew = np.ones(K)
    ew[-1] = eos_coef

    target_classes = np.full((B, Q), num_classes, dtype=np.int64)
    src_b, tgt_b = [], []
    for b, t in enumerate(targets):
        n = len(t['labels'])
        target_classes[b, :n] = np.asarray(t['labels'])[:n]
        src_b.append(pred_boxes[b, :n])
        tgt_b.append(np.asarray(t['boxes'], np.float64)[:n].reshape(n, 4))
    src_b = np.concatenate(src_b, 0)
    tgt_b = np.concatenate(tgt_b, 0)
    num_boxes = max(float(sum(len(t['labels']) for t in targets)), 1.0)

    # weighted cross entropy
    z = pred_logits - pred_logits.max(-1, keepdims=True)
    logp = z - np.log(np.exp(z).sum(-1, keepdims=True))
    nll = -np.take_along_axis(logp, target_classes[..., None], axis=-1)[..., 0]
    w = ew[target_classes]
    loss_ce = (w * nll).sum() / w.sum()

    # cardinality
    card_pred = (pred_logits.argmax(-1) != K - 1).sum(1).astype(np.float64)
    tlen = np.array([len(t['labels']) for t in targets], np.float64)
    card_err = np.abs(card_pred - tlen).mean()

    # boxes
    loss_bbox = np.abs(src_b - tgt_b).sum() / num_boxes

    def to_xyxy(b):
        cx, cy, w_, h_ = b[:, 0], b[:, 1], b[:, 2], b[:, 3]
        return np.stack([cx - 0.5 * w_, cy - 0.5 * h_, cx + 0.5 * w_, cy + 0.5 * h_], -1)

    s, t = to_xyxy(src_b), to_xyxy(tgt_b)
    area_s = (s[:, 2] - s[:, 0]) * (s[:, 3] - s[:, 1])
    area_t = (t[:, 2] - t[:, 0]) * (t[:, 3] - t[:, 1])
    lt = np.maximum(s[:, :2], t[:, :2])
    rb = np.minimum(s[:, 2:], t[:, 2:])
    wh = np.clip(rb - lt, 0, None)
    inter = wh[:, 0] * wh[:, 1]
    union = area_s + area_t - inter
    iou = inter / union
    lt_c = np.minimum(s[:, :2], t[:, :2])
    rb_c = np.maximum(s[:, 2:], t[:, 2:])
    wh_c = np.clip(rb_c - lt_c, 0, None)
    area_c = wh_c[:, 0] * wh_c[:, 1]
    giou = iou - (area_c - union) / area_c
    loss_giou = (1.0 - giou).sum() / num_boxes

    return {'loss_ce': loss_ce, 'cardinality_error': card_err,
            'loss_bbox': loss_bbox, 'loss_giou': loss_giou}


if __name__ == "__main__":
    def make_case(seed, B, Q, num_classes, n_tgt):
        K = num_classes + 1
        key = jax.random.PRNGKey(seed)
        k1, k2, k3, kt = jax.random.split(key, 4)
        pred_logits = jax.random.normal(k1, (B, Q, K), dtype=jnp.float32)
        pred_boxes = jnp.concatenate(
            [jax.random.uniform(k2, (B, Q, 2), minval=0.25, maxval=0.75),
             jax.random.uniform(k3, (B, Q, 2), minval=0.10, maxval=0.40)], axis=-1)
        targets = []
        tkeys = jax.random.split(kt, 3 * B)
        for b, n in enumerate(n_tgt):
            if n:
                labels = np.asarray(jax.random.randint(tkeys[3 * b], (n,), 0, num_classes))
                ctr = np.asarray(jax.random.uniform(tkeys[3 * b + 1], (n, 2), minval=0.25, maxval=0.75))
                siz = np.asarray(jax.random.uniform(tkeys[3 * b + 2], (n, 2), minval=0.10, maxval=0.40))
                boxes = np.concatenate([ctr, siz], axis=-1).astype(np.float32)
            else:
                labels = np.zeros((0,), np.int64)
                boxes = np.zeros((0, 4), np.float32)
            targets.append({'labels': labels, 'boxes': boxes})
        return {'pred_logits': pred_logits, 'pred_boxes': pred_boxes}, targets, num_classes

    cases = [
        make_case(0, B=2, Q=8, num_classes=4, n_tgt=[3, 5]),
        # B=5 exercises TB>1 batch-blocking plus a padded (masked) image and an empty-target image.
        make_case(1, B=5, Q=16, num_classes=3, n_tgt=[2, 0, 7, 1, 4]),
    ]

    for outputs, targets, num_classes in cases:
        criterion = SetCriterionPallas(num_classes=num_classes, eos_coef=0.1)
        losses = criterion(outputs, targets)
        losses = jax.tree_util.tree_map(jax.block_until_ready, losses)

        # Reference uses the same bf16-quantized logits the kernel streams from HBM,
        # so the comparison isolates the in-kernel (f32) math.
        logits_for_ref = np.asarray(outputs['pred_logits'].astype(jnp.bfloat16).astype(jnp.float32))
        ref = _reference_numpy(logits_for_ref, np.asarray(outputs['pred_boxes']), targets,
                               num_classes, eos_coef=0.1)
        for name in ('loss_ce', 'cardinality_error', 'loss_bbox', 'loss_giou'):
            np.testing.assert_allclose(float(losses[name]), float(ref[name]),
                                       rtol=3e-4, atol=5e-5)

    print("KERNEL_OK")
</pallas_src>

<mosaic_0001>
module attributes {stable_mosaic.version = 11 : i64} {
  func.func @_criterion_kernel(%arg0: i32, %arg1: memref<1x8x5xbf16, #tpu.memory_space<vmem>>, %arg2: memref<1x8x1xi32, #tpu.memory_space<vmem>>, %arg3: memref<1x8x128xf32, #tpu.memory_space<vmem>>, %arg4: memref<1x1x128xf32, #tpu.memory_space<vmem>>, %arg5: memref<1x1x1xf32, #tpu.memory_space<vmem>>, %arg6: memref<1x1x128xf32, #tpu.memory_space<vmem>>) attributes {dimension_semantics = [#tpu.dimension_semantics<parallel>], iteration_bounds = array<i64: 2>, scalar_prefetch = 0 : i64, scratch_operands = 0 : i64, tpu.core_type = #tpu.core_type<tc>, window_params = [{transform_indices = @transform_0, window_bounds = array<i64: 1, 8, 5>}, {transform_indices = @transform_1, window_bounds = array<i64: 1, 8, 1>}, {transform_indices = @transform_2, window_bounds = array<i64: 1, 8, 128>}, {transform_indices = @transform_3, window_bounds = array<i64: 1, 1, 128>}, {transform_indices = @transform_4, window_bounds = array<i64: 1, 1, 1>}, {transform_indices = @transform_5, window_bounds = array<i64: 1, 1, 128>}]} {
    %c0 = arith.constant 0 : index
    %c0_0 = arith.constant 0 : index
    %c0_1 = arith.constant 0 : index
    %0 = vector.load %arg1[%c0, %c0_0, %c0_1] : memref<1x8x5xbf16, #tpu.memory_space<vmem>>, vector<1x8x5xbf16>
    %1 = arith.extf %0 : vector<1x8x5xbf16> to vector<1x8x5xf32>
    %c0_2 = arith.constant 0 : index
    %c0_3 = arith.constant 0 : index
    %c0_4 = arith.constant 0 : index
    %2 = vector.load %arg2[%c0_2, %c0_3, %c0_4] : memref<1x8x1xi32, #tpu.memory_space<vmem>>, vector<1x8x1xi32>
    %c0_5 = arith.constant 0 : index
    %c0_6 = arith.constant 0 : index
    %c0_7 = arith.constant 0 : index
    %3 = vector.load %arg5[%c0_5, %c0_6, %c0_7] : memref<1x1x1xf32, #tpu.memory_space<vmem>>, vector<1x1x1xf32>
    %cst = arith.constant dense<0xFF800000> : vector<1x8xf32>
    %4 = vector.multi_reduction <maximumf>, %1, %cst [2] : vector<1x8x5xf32> to vector<1x8xf32>
    %5 = vector.shape_cast %4 : vector<1x8xf32> to vector<1x8x1xf32>
    %6 = vector.broadcast %5 : vector<1x8x1xf32> to vector<1x8x5xf32>
    %7 = arith.subf %1, %6 : vector<1x8x5xf32>
    %8 = math.exp %7 : vector<1x8x5xf32>
    %cst_8 = arith.constant dense<0.000000e+00> : vector<1x8xf32>
    %9 = vector.multi_reduction <add>, %8, %cst_8 [2] : vector<1x8x5xf32> to vector<1x8xf32>
    %10 = vector.shape_cast %9 : vector<1x8xf32> to vector<1x8x1xf32>
    %11 = math.log %10 : vector<1x8x1xf32>
    %12 = arith.addf %5, %11 : vector<1x8x1xf32>
    %13 = tpu.iota {dimensions = array<i32: 2>} : vector<1x8x5xi32>
    %14 = vector.broadcast %2 : vector<1x8x1xi32> to vector<1x8x5xi32>
    %15 = arith.cmpi eq, %13, %14 : vector<1x8x5xi32>
    %cst_9 = arith.constant 0.000000e+00 : f32
    %16 = vector.broadcast %cst_9 : f32 to vector<1x8x5xf32>
    %17 = arith.select %15, %1, %16 : vector<1x8x5xi1>, vector<1x8x5xf32>
    %cst_10 = arith.constant dense<0.000000e+00> : vector<1x8xf32>
    %18 = vector.multi_reduction <add>, %17, %cst_10 [2] : vector<1x8x5xf32> to vector<1x8xf32>
    %19 = vector.shape_cast %18 : vector<1x8xf32> to vector<1x8x1xf32>
    %20 = arith.subf %12, %19 : vector<1x8x1xf32>
    %c4_i32 = arith.constant 4 : i32
    %21 = vector.broadcast %c4_i32 : i32 to vector<1x8x1xi32>
    %22 = arith.cmpi eq, %2, %21 : vector<1x8x1xi32>
    %cst_11 = arith.constant 1.000000e-01 : f32
    %cst_12 = arith.constant 1.000000e+00 : f32
    %23 = vector.broadcast %cst_11 : f32 to vector<1x8x1xf32>
    %24 = vector.broadcast %cst_12 : f32 to vector<1x8x1xf32>
    %25 = arith.select %22, %23, %24 : vector<1x8x1xi1>, vector<1x8x1xf32>
    %26 = vector.broadcast %3 : vector<1x1x1xf32> to vector<1x8x1xf32>
    %27 = arith.mulf %25, %26 : vector<1x8x1xf32>
    %28 = arith.mulf %27, %20 : vector<1x8x1xf32>
    %29 = vector.shape_cast %28 : vector<1x8x1xf32> to vector<1x1x8x1xf32>
    %cst_13 = arith.constant dense<0.000000e+00> : vector<1xf32>
    %30 = vector.multi_reduction <add>, %29, %cst_13 [1, 2, 3] : vector<1x1x8x1xf32> to vector<1xf32>
    %31 = vector.shape_cast %30 : vector<1xf32> to vector<1x1x1x1xf32>
    %32 = vector.extract %31[0, 0, 0, 0] : f32 from vector<1x1x1x1xf32>
    %33 = vector.shape_cast %27 : vector<1x8x1xf32> to vector<1x1x8x1xf32>
    %cst_14 = arith.constant dense<0.000000e+00> : vector<1xf32>
    %34 = vector.multi_reduction <add>, %33, %cst_14 [1, 2, 3] : vector<1x1x8x1xf32> to vector<1xf32>
    %35 = vector.shape_cast %34 : vector<1xf32> to vector<1x1x1x1xf32>
    %36 = vector.extract %35[0, 0, 0, 0] : f32 from vector<1x1x1x1xf32>
    %c4_i32_15 = arith.constant 4 : i32
    %37 = vector.broadcast %c4_i32_15 : i32 to vector<1x8x5xi32>
    %38 = arith.cmpi slt, %13, %37 : vector<1x8x5xi32>
    %cst_16 = arith.constant 0.000000e+00 : f32
    %39 = vector.broadcast %cst_16 : f32 to vector<1x8x5xf32>
    %40 = arith.cmpf oeq, %7, %39 : vector<1x8x5xf32>
    %41 = arith.andi %38, %40 : vector<1x8x5xi1>
    %cst_17 = arith.constant 1.000000e+00 : f32
    %cst_18 = arith.constant 0.000000e+00 : f32
    %42 = vector.broadcast %cst_17 : f32 to vector<1x8x5xf32>
    %43 = vector.broadcast %cst_18 : f32 to vector<1x8x5xf32>
    %44 = arith.select %41, %42, %43 : vector<1x8x5xi1>, vector<1x8x5xf32>
    %cst_19 = arith.constant dense<0xFF800000> : vector<1x8xf32>
    %45 = vector.multi_reduction <maximumf>, %44, %cst_19 [2] : vector<1x8x5xf32> to vector<1x8xf32>
    %46 = vector.shape_cast %45 : vector<1x8xf32> to vector<1x8x1xf32>
    %cst_20 = arith.constant dense<0.000000e+00> : vector<1x1xf32>
    %47 = vector.multi_reduction <add>, %46, %cst_20 [1] : vector<1x8x1xf32> to vector<1x1xf32>
    %48 = vector.shape_cast %47 : vector<1x1xf32> to vector<1x1x1xf32>
    %c0_21 = arith.constant 0 : index
    %c0_22 = arith.constant 0 : index
    %c0_23 = arith.constant 0 : index
    %49 = vector.load %arg4[%c0_21, %c0_22, %c0_23] : memref<1x1x128xf32, #tpu.memory_space<vmem>>, vector<1x1x128xf32>
    %cst_24 = arith.constant dense<0.000000e+00> : vector<1x1xf32>
    %50 = vector.multi_reduction <add>, %49, %cst_24 [2] : vector<1x1x128xf32> to vector<1x1xf32>
    %51 = vector.shape_cast %50 : vector<1x1xf32> to vector<1x1x1xf32>
    %52 = arith.subf %48, %51 : vector<1x1x1xf32>
    %53 = math.absf %52 : vector<1x1x1xf32>
    %54 = arith.mulf %53, %3 : vector<1x1x1xf32>
    %55 = vector.shape_cast %54 : vector<1x1x1xf32> to vector<1x1x1x1xf32>
    %cst_25 = arith.constant dense<0.000000e+00> : vector<1xf32>
    %56 = vector.multi_reduction <add>, %55, %cst_25 [1, 2, 3] : vector<1x1x1x1xf32> to vector<1xf32>
    %57 = vector.shape_cast %56 : vector<1xf32> to vector<1x1x1x1xf32>
    %58 = vector.extract %57[0, 0, 0, 0] : f32 from vector<1x1x1x1xf32>
    %c0_26 = arith.constant 0 : index
    %c0_27 = arith.constant 0 : index
    %c0_28 = arith.constant 0 : index
    %59 = vector.load %arg3[%c0_26, %c0_27, %c0_28] : memref<1x8x128xf32, #tpu.memory_space<vmem>>, vector<1x8x128xf32>
    %60 = vector.extract_strided_slice %59 {offsets = [0, 0, 0], sizes = [1, 4, 128], strides = [1, 1, 1]} : vector<1x8x128xf32> to vector<1x4x128xf32>
    %61 = vector.extract_strided_slice %59 {offsets = [0, 4, 0], sizes = [1, 4, 128], strides = [1, 1, 1]} : vector<1x8x128xf32> to vector<1x4x128xf32>
    %62 = vector.extract_strided_slice %60 {offsets = [0, 0, 0], sizes = [1, 2, 128], strides = [1, 1, 1]} : vector<1x4x128xf32> to vector<1x2x128xf32>
    %63 = vector.extract_strided_slice %60 {offsets = [0, 2, 0], sizes = [1, 2, 128], strides = [1, 1, 1]} : vector<1x4x128xf32> to vector<1x2x128xf32>
    %64 = arith.subf %62, %63 : vector<1x2x128xf32>
    %65 = math.absf %64 : vector<1x2x128xf32>
    %66 = vector.extract_strided_slice %61 {offsets = [0, 0, 0], sizes = [1, 2, 128], strides = [1, 1, 1]} : vector<1x4x128xf32> to vector<1x2x128xf32>
    %67 = vector.extract_strided_slice %61 {offsets = [0, 2, 0], sizes = [1, 2, 128], strides = [1, 1, 1]} : vector<1x4x128xf32> to vector<1x2x128xf32>
    %68 = arith.subf %66, %67 : vector<1x2x128xf32>
    %69 = math.absf %68 : vector<1x2x128xf32>
    %70 = arith.addf %65, %69 : vector<1x2x128xf32>
    %71 = vector.broadcast %49 : vector<1x1x128xf32> to vector<1x2x128xf32>
    %72 = arith.mulf %70, %71 : vector<1x2x128xf32>
    %73 = vector.shape_cast %72 : vector<1x2x128xf32> to vector<1x1x2x128xf32>
    %cst_29 = arith.constant dense<0.000000e+00> : vector<1xf32>
    %74 = vector.multi_reduction <add>, %73, %cst_29 [1, 2, 3] : vector<1x1x2x128xf32> to vector<1xf32>
    %75 = vector.shape_cast %74 : vector<1xf32> to vector<1x1x1x1xf32>
    %76 = vector.extract %75[0, 0, 0, 0] : f32 from vector<1x1x1x1xf32>
    %cst_30 = arith.constant 5.000000e-01 : f32
    %77 = vector.broadcast %cst_30 : f32 to vector<1x4x128xf32>
    %78 = arith.mulf %77, %61 : vector<1x4x128xf32>
    %79 = arith.subf %60, %78 : vector<1x4x128xf32>
    %cst_31 = arith.constant 5.000000e-01 : f32
    %80 = vector.broadcast %cst_31 : f32 to vector<1x4x128xf32>
    %81 = arith.mulf %80, %61 : vector<1x4x128xf32>
    %82 = arith.addf %60, %81 : vector<1x4x128xf32>
    %83 = arith.subf %82, %79 : vector<1x4x128xf32>
    %84 = vector.extract_strided_slice %83 {offsets = [0, 0, 0], sizes = [1, 1, 128], strides = [1, 1, 1]} : vector<1x4x128xf32> to vector<1x1x128xf32>
    %85 = vector.extract_strided_slice %83 {offsets = [0, 1, 0], sizes = [1, 1, 128], strides = [1, 1, 1]} : vector<1x4x128xf32> to vector<1x1x128xf32>
    %86 = arith.mulf %84, %85 : vector<1x1x128xf32>
    %87 = vector.extract_strided_slice %83 {offsets = [0, 2, 0], sizes = [1, 1, 128], strides = [1, 1, 1]} : vector<1x4x128xf32> to vector<1x1x128xf32>
    %88 = vector.extract_strided_slice %83 {offsets = [0, 3, 0], sizes = [1, 1, 128], strides = [1, 1, 1]} : vector<1x4x128xf32> to vector<1x1x128xf32>
    %89 = arith.mulf %87, %88 : vector<1x1x128xf32>
    %90 = vector.extract_strided_slice %79 {offsets = [0, 0, 0], sizes = [1, 2, 128], strides = [1, 1, 1]} : vector<1x4x128xf32> to vector<1x2x128xf32>
    %91 = vector.extract_strided_slice %79 {offsets = [0, 2, 0], sizes = [1, 2, 128], strides = [1, 1, 1]} : vector<1x4x128xf32> to vector<1x2x128xf32>
    %92 = arith.maximumf %90, %91 : vector<1x2x128xf32>
    %93 = vector.extract_strided_slice %82 {offsets = [0, 0, 0], sizes = [1, 2, 128], strides = [1, 1, 1]} : vector<1x4x128xf32> to vector<1x2x128xf32>
    %94 = vector.extract_strided_slice %82 {offsets = [0, 2, 0], sizes = [1, 2, 128], strides = [1, 1, 1]} : vector<1x4x128xf32> to vector<1x2x128xf32>
    %95 = arith.minimumf %93, %94 : vector<1x2x128xf32>
    %96 = arith.subf %95, %92 : vector<1x2x128xf32>
    %cst_32 = arith.constant 0.000000e+00 : f32
    %97 = vector.broadcast %cst_32 : f32 to vector<1x2x128xf32>
    %98 = arith.maximumf %96, %97 : vector<1x2x128xf32>
    %99 = vector.extract_strided_slice %98 {offsets = [0, 0, 0], sizes = [1, 1, 128], strides = [1, 1, 1]} : vector<1x2x128xf32> to vector<1x1x128xf32>
    %100 = vector.extract_strided_slice %98 {offsets = [0, 1, 0], sizes = [1, 1, 128], strides = [1, 1, 1]} : vector<1x2x128xf32> to vector<1x1x128xf32>
    %101 = arith.mulf %99, %100 : vector<1x1x128xf32>
    %102 = arith.addf %86, %89 : vector<1x1x128xf32>
    %103 = arith.subf %102, %101 : vector<1x1x128xf32>
    %104 = arith.divf %101, %103 : vector<1x1x128xf32>
    %105 = vector.extract_strided_slice %79 {offsets = [0, 0, 0], sizes = [1, 2, 128], strides = [1, 1, 1]} : vector<1x4x128xf32> to vector<1x2x128xf32>
    %106 = vector.extract_strided_slice %79 {offsets = [0, 2, 0], sizes = [1, 2, 128], strides = [1, 1, 1]} : vector<1x4x128xf32> to vector<1x2x128xf32>
    %107 = arith.minimumf %105, %106 : vector<1x2x128xf32>
    %108 = vector.extract_strided_slice %82 {offsets = [0, 0, 0], sizes = [1, 2, 128], strides = [1, 1, 1]} : vector<1x4x128xf32> to vector<1x2x128xf32>
    %109 = vector.extract_strided_slice %82 {offsets = [0, 2, 0], sizes = [1, 2, 128], strides = [1, 1, 1]} : vector<1x4x128xf32> to vector<1x2x128xf32>
    %110 = arith.maximumf %108, %109 : vector<1x2x128xf32>
    %111 = arith.subf %110, %107 : vector<1x2x128xf32>
    %cst_33 = arith.constant 0.000000e+00 : f32
    %112 = vector.broadcast %cst_33 : f32 to vector<1x2x128xf32>
    %113 = arith.maximumf %111, %112 : vector<1x2x128xf32>
    %114 = vector.extract_strided_slice %113 {offsets = [0, 0, 0], sizes = [1, 1, 128], strides = [1, 1, 1]} : vector<1x2x128xf32> to vector<1x1x128xf32>
    %115 = vector.extract_strided_slice %113 {offsets = [0, 1, 0], sizes = [1, 1, 128], strides = [1, 1, 1]} : vector<1x2x128xf32> to vector<1x1x128xf32>
    %116 = arith.mulf %114, %115 : vector<1x1x128xf32>
    %117 = arith.subf %116, %103 : vector<1x1x128xf32>
    %118 = arith.divf %117, %116 : vector<1x1x128xf32>
    %119 = arith.subf %104, %118 : vector<1x1x128xf32>
    %cst_34 = arith.constant 0.000000e+00 : f32
    %120 = vector.broadcast %cst_34 : f32 to vector<1x1x128xf32>
    %121 = arith.cmpf ogt, %49, %120 : vector<1x1x128xf32>
    %cst_35 = arith.constant 1.000000e+00 : f32
    %122 = vector.broadcast %cst_35 : f32 to vector<1x1x128xf32>
    %123 = arith.subf %122, %119 : vector<1x1x128xf32>
    %cst_36 = arith.constant 0.000000e+00 : f32
    %124 = vector.broadcast %cst_36 : f32 to vector<1x1x128xf32>
    %125 = arith.select %121, %123, %124 : vector<1x1x128xi1>, vector<1x1x128xf32>
    %126 = vector.shape_cast %125 : vector<1x1x128xf32> to vector<1x1x1x128xf32>
    %cst_37 = arith.constant dense<0.000000e+00> : vector<1xf32>
    %127 = vector.multi_reduction <add>, %126, %cst_37 [1, 2, 3] : vector<1x1x1x128xf32> to vector<1xf32>
    %128 = vector.shape_cast %127 : vector<1xf32> to vector<1x1x1x1xf32>
    %129 = vector.extract %128[0, 0, 0, 0] : f32 from vector<1x1x1x1xf32>
    %130 = tpu.iota {dimensions = array<i32: 2>} : vector<1x1x128xi32>
    %c0_i32 = arith.constant 0 : i32
    %131 = vector.broadcast %c0_i32 : i32 to vector<1x1x128xi32>
    %132 = arith.cmpi eq, %130, %131 : vector<1x1x128xi32>
    %cst_38 = arith.constant 0.000000e+00 : f32
    %133 = vector.broadcast %32 : f32 to vector<1x1x128xf32>
    %134 = vector.broadcast %cst_38 : f32 to vector<1x1x128xf32>
    %135 = arith.select %132, %133, %134 : vector<1x1x128xi1>, vector<1x1x128xf32>
    %c1_i32 = arith.constant 1 : i32
    %136 = vector.broadcast %c1_i32 : i32 to vector<1x1x128xi32>
    %137 = arith.cmpi eq, %130, %136 : vector<1x1x128xi32>
    %cst_39 = arith.constant 0.000000e+00 : f32
    %138 = vector.broadcast %36 : f32 to vector<1x1x128xf32>
    %139 = vector.broadcast %cst_39 : f32 to vector<1x1x128xf32>
    %140 = arith.select %137, %138, %139 : vector<1x1x128xi1>, vector<1x1x128xf32>
    %141 = arith.addf %135, %140 : vector<1x1x128xf32>
    %c2_i32 = arith.constant 2 : i32
    %142 = vector.broadcast %c2_i32 : i32 to vector<1x1x128xi32>
    %143 = arith.cmpi eq, %130, %142 : vector<1x1x128xi32>
    %cst_40 = arith.constant 0.000000e+00 : f32
    %144 = vector.broadcast %58 : f32 to vector<1x1x128xf32>
    %145 = vector.broadcast %cst_40 : f32 to vector<1x1x128xf32>
    %146 = arith.select %143, %144, %145 : vector<1x1x128xi1>, vector<1x1x128xf32>
    %147 = arith.addf %141, %146 : vector<1x1x128xf32>
    %c3_i32 = arith.constant 3 : i32
    %148 = vector.broadcast %c3_i32 : i32 to vector<1x1x128xi32>
    %149 = arith.cmpi eq, %130, %148 : vector<1x1x128xi32>
    %cst_41 = arith.constant 0.000000e+00 : f32
    %150 = vector.broadcast %76 : f32 to vector<1x1x128xf32>
    %151 = vector.broadcast %cst_41 : f32 to vector<1x1x128xf32>
    %152 = arith.select %149, %150, %151 : vector<1x1x128xi1>, vector<1x1x128xf32>
    %153 = arith.addf %147, %152 : vector<1x1x128xf32>
    %c4_i32_42 = arith.constant 4 : i32
    %154 = vector.broadcast %c4_i32_42 : i32 to vector<1x1x128xi32>
    %155 = arith.cmpi eq, %130, %154 : vector<1x1x128xi32>
    %cst_43 = arith.constant 0.000000e+00 : f32
    %156 = vector.broadcast %129 : f32 to vector<1x1x128xf32>
    %157 = vector.broadcast %cst_43 : f32 to vector<1x1x128xf32>
    %158 = arith.select %155, %156, %157 : vector<1x1x128xi1>, vector<1x1x128xf32>
    %159 = arith.addf %153, %158 : vector<1x1x128xf32>
    %c0_44 = arith.constant 0 : index
    %c0_45 = arith.constant 0 : index
    %c0_46 = arith.constant 0 : index
    %160 = vector.load %arg6[%c0_44, %c0_45, %c0_46] : memref<1x1x128xf32, #tpu.memory_space<vmem>>, vector<1x1x128xf32>
    tpu.vector_store %arg6[%c0_44, %c0_45, %c0_46], %159 {strides = array<i32>} : memref<1x1x128xf32, #tpu.memory_space<vmem>>, vector<1x1x128xf32>,
    return
  }
  func.func @transform_0(%arg0: i32) -> (i32, i32, i32) {
    %c0_i32 = arith.constant 0 : i32
    %c0_i32_0 = arith.constant 0 : i32
    %c0_i32_1 = arith.constant 0 : i32
    return %arg0, %c0_i32, %c0_i32_0 : i32, i32, i32
  }
  func.func @transform_1(%arg0: i32) -> (i32, i32, i32) {
    %c0_i32 = arith.constant 0 : i32
    %c0_i32_0 = arith.constant 0 : i32
    %c0_i32_1 = arith.constant 0 : i32
    return %arg0, %c0_i32, %c0_i32_0 : i32, i32, i32
  }
  func.func @transform_2(%arg0: i32) -> (i32, i32, i32) {
    %c0_i32 = arith.constant 0 : i32
    %c0_i32_0 = arith.constant 0 : i32
    %c0_i32_1 = arith.constant 0 : i32
    return %arg0, %c0_i32, %c0_i32_0 : i32, i32, i32
  }
  func.func @transform_3(%arg0: i32) -> (i32, i32, i32) {
    %c0_i32 = arith.constant 0 : i32
    %c0_i32_0 = arith.constant 0 : i32
    %c0_i32_1 = arith.constant 0 : i32
    return %arg0, %c0_i32, %c0_i32_0 : i32, i32, i32
  }
  func.func @transform_4(%arg0: i32) -> (i32, i32, i32) {
    %c0_i32 = arith.constant 0 : i32
    %c0_i32_0 = arith.constant 0 : i32
    %c0_i32_1 = arith.constant 0 : i32
    return %arg0, %c0_i32, %c0_i32_0 : i32, i32, i32
  }
  func.func @transform_5(%arg0: i32) -> (i32, i32, i32) {
    %c0_i32 = arith.constant 0 : i32
    %c0_i32_0 = arith.constant 0 : i32
    %c0_i32_1 = arith.constant 0 : i32
    return %arg0, %c0_i32, %c0_i32_0 : i32, i32, i32
  }
}

</mosaic_0001>

<llo_original>
// kernel: run.1
$region0: #{run.1}
  #allocation0 [shape = 'u32[]', space=smem, size = 0x4, offset = 0x4, fixed_abs, tag = 'smem constant byte address 0x4 - core index']
  #allocation1 [shape = 'u32[144,128]{1,0:T(1,128)}', space=vmem, size = 0x12000, scoped, tag = 'internal scratch']
  %s0 = inlined_call_operand.vmem [shape: bf16[2,8,5], index: 0, kind: input, shape index: {}]
  %s1 = inlined_call_operand.vmem [shape: s32[2,8,1], index: 1, kind: input, shape index: {}]
  %s2 = inlined_call_operand.vmem [shape: f32[2,8,128], index: 2, kind: input, shape index: {}]
  %s3 = inlined_call_operand.vmem [shape: f32[2,1,128], index: 3, kind: input, shape index: {}]
  %s4 = inlined_call_operand.vmem [shape: f32[2,1,1], index: 4, kind: input, shape index: {}]
  %s5 = inlined_call_operand.vmem [shape: f32[2,1,128], index: 5, kind: output, shape index: {}]
  %s6 = sld [smem:[#allocation0]]
  $region53: #{run.1} parent=0
    _
  %s8 = ssub.s32 1, %s6
  %s9 = scalar_select 0, %s8, %s6
  loop: start=0, step=1, limit=4
  $region2: #{run.1} parent=0 // loop_pre_header
    _
  $region3: #{run.1} parent=0 // loop_header
    %s11 = sphi 0, %s15
    %p12 = scmp.ge.s32.totalorder %s11, 4
    %s21 = sphi 0, %s23
    %s24 = sphi 0, %s21
    %s25 = sphi 0, %s24
    %s41 = sphi 0, %s25
    %s47 = sphi 0, %s49
    %s50 = sphi 0, %s47
    %s51 = sphi 0, %s50
    %s67 = sphi 0, %s51
    %s73 = sphi 0, %s75
    %s76 = sphi 0, %s73
    %s77 = sphi 0, %s76
    %s93 = sphi 0, %s77
    %s99 = sphi 0, %s101
    %s102 = sphi 0, %s99
    %s103 = sphi 0, %s102
    %s119 = sphi 0, %s103
    %s125 = sphi 0, %s127
    %s128 = sphi 0, %s125
    %s129 = sphi 0, %s128
    %s145 = sphi 0, %s129
    %s151 = sphi 0, %s153
    %s154 = sphi 0, %s151
    %s155 = sphi 0, %s154
    %s171 = sphi 0, %s155
  $region4: #{run.1} parent=0 // loop_header_branch
    %14 = sbr.rel (%p12) target = $region8
  $region5: #{run.1} parent=0 // loop_body
    %s16 = ssub.s32 %s11, 1
    %s17 = ssub.s32 %s11, 2
    %s18 = sadd.s32 %s11, 1
    %s19 = ssub.s32 %s11, %s18
    %p20 = scmp.eq.s32.totalorder %s19, 0
    %s22 = sadd.s32 %s21, 1
    %s23 = scalar_select %p20, %s21, %s22
    %p26 = pneg %p20
    %p27 = scmp.eq.s32.totalorder %s11, 1
    %p28 = por %p26, %p27
    %p29 = scmp.ne.s32.totalorder %s21, %s24
    %p30 = scmp.eq.s32.totalorder %s11, 0
    %p31 = por %p29, %p30
    %p32 = scmp.ne.s32.totalorder %s21, %s24
    %p33 = scmp.eq.s32.totalorder %s16, 1
    %p34 = por %p32, %p33
    %p35 = scmp.ne.s32.totalorder %s24, %s25
    %p36 = scmp.eq.s32.totalorder %s16, 0
    %p37 = por %p35, %p36
    %p38 = scmp.ne.s32.totalorder %s24, %s25
    %p39 = scmp.eq.s32.totalorder %s17, 1
    %p40 = por %p38, %p39
    %p42 = scmp.ne.s32.totalorder %s25, %s41
    %p43 = scmp.eq.s32.totalorder %s17, 0
    %p44 = por %p42, %p43
    %s45 = ssub.s32 %s11, %s18
    %p46 = scmp.eq.s32.totalorder %s45, 0
    %s48 = sadd.s32 %s47, 1
    %s49 = scalar_select %p46, %s47, %s48
    %p52 = pneg %p46
    %p53 = scmp.eq.s32.totalorder %s11, 1
    %p54 = por %p52, %p53
    %p55 = scmp.ne.s32.totalorder %s47, %s50
    %p56 = scmp.eq.s32.totalorder %s11, 0
    %p57 = por %p55, %p56
    %p58 = scmp.ne.s32.totalorder %s47, %s50
    %p59 = scmp.eq.s32.totalorder %s16, 1
    %p60 = por %p58, %p59
    %p61 = scmp.ne.s32.totalorder %s50, %s51
    %p62 = scmp.eq.s32.totalorder %s16, 0
    %p63 = por %p61, %p62
    %p64 = scmp.ne.s32.totalorder %s50, %s51
    %p65 = scmp.eq.s32.totalorder %s17, 1
    %p66 = por %p64, %p65
    %p68 = scmp.ne.s32.totalorder %s51, %s67
    %p69 = scmp.eq.s32.totalorder %s17, 0
    %p70 = por %p68, %p69
    %s71 = ssub.s32 %s11, %s18
    %p72 = scmp.eq.s32.totalorder %s71, 0
    %s74 = sadd.s32 %s73, 1
    %s75 = scalar_select %p72, %s73, %s74
    %p78 = pneg %p72
    %p79 = scmp.eq.s32.totalorder %s11, 1
    %p80 = por %p78, %p79
    %p81 = scmp.ne.s32.totalorder %s73, %s76
    %p82 = scmp.eq.s32.totalorder %s11, 0
    %p83 = por %p81, %p82
    %p84 = scmp.ne.s32.totalorder %s73, %s76
    %p85 = scmp.eq.s32.totalorder %s16, 1
    %p86 = por %p84, %p85
    %p87 = scmp.ne.s32.totalorder %s76, %s77
    %p88 = scmp.eq.s32.totalorder %s16, 0
    %p89 = por %p87, %p88
    %p90 = scmp.ne.s32.totalorder %s76, %s77
    %p91 = scmp.eq.s32.totalorder %s17, 1
    %p92 = por %p90, %p91
    %p94 = scmp.ne.s32.totalorder %s77, %s93
    %p95 = scmp.eq.s32.totalorder %s17, 0
    %p96 = por %p94, %p95
    %s97 = ssub.s32 %s11, %s18
    %p98 = scmp.eq.s32.totalorder %s97, 0
    %s100 = sadd.s32 %s99, 1
    %s101 = scalar_select %p98, %s99, %s100
    %p104 = pneg %p98
    %p105 = scmp.eq.s32.totalorder %s11, 1
    %p106 = por %p104, %p105
    %p107 = scmp.ne.s32.totalorder %s99, %s102
    %p108 = scmp.eq.s32.totalorder %s11, 0
    %p109 = por %p107, %p108
    %p110 = scmp.ne.s32.totalorder %s99, %s102
    %p111 = scmp.eq.s32.totalorder %s16, 1
    %p112 = por %p110, %p111
    %p113 = scmp.ne.s32.totalorder %s102, %s103
    %p114 = scmp.eq.s32.totalorder %s16, 0
    %p115 = por %p113, %p114
    %p116 = scmp.ne.s32.totalorder %s102, %s103
    %p117 = scmp.eq.s32.totalorder %s17, 1
    %p118 = por %p116, %p117
    %p120 = scmp.ne.s32.totalorder %s103, %s119
    %p121 = scmp.eq.s32.totalorder %s17, 0
    %p122 = por %p120, %p121
    %s123 = ssub.s32 %s11, %s18
    %p124 = scmp.eq.s32.totalorder %s123, 0
    %s126 = sadd.s32 %s125, 1
    %s127 = scalar_select %p124, %s125, %s126
    %p130 = pneg %p124
    %p131 = scmp.eq.s32.totalorder %s11, 1
    %p132 = por %p130, %p131
    %p133 = scmp.ne.s32.totalorder %s125, %s128
    %p134 = scmp.eq.s32.totalorder %s11, 0
    %p135 = por %p133, %p134
    %p136 = scmp.ne.s32.totalorder %s125, %s128
    %p137 = scmp.eq.s32.totalorder %s16, 1
    %p138 = por %p136, %p137
    %p139 = scmp.ne.s32.totalorder %s128, %s129
    %p140 = scmp.eq.s32.totalorder %s16, 0
    %p141 = por %p139, %p140
    %p142 = scmp.ne.s32.totalorder %s128, %s129
    %p143 = scmp.eq.s32.totalorder %s17, 1
    %p144 = por %p142, %p143
    %p146 = scmp.ne.s32.totalorder %s129, %s145
    %p147 = scmp.eq.s32.totalorder %s17, 0
    %p148 = por %p146, %p147
    %s149 = ssub.s32 %s11, %s18
    %p150 = scmp.eq.s32.totalorder %s149, 0
    %s152 = sadd.s32 %s151, 1
    %s153 = scalar_select %p150, %s151, %s152
    %p156 = pneg %p150
    %p157 = scmp.eq.s32.totalorder %s11, 1
    %p158 = por %p156, %p157
    %p159 = scmp.ne.s32.totalorder %s151, %s154
    %p160 = scmp.eq.s32.totalorder %s11, 0
    %p161 = por %p159, %p160
    %p162 = scmp.ne.s32.totalorder %s151, %s154
    %p163 = scmp.eq.s32.totalorder %s16, 1
    %p164 = por %p162, %p163
    %p165 = scmp.ne.s32.totalorder %s154, %s155
    %p166 = scmp.eq.s32.totalorder %s16, 0
    %p167 = por %p165, %p166
    %p168 = scmp.ne.s32.totalorder %s154, %s155
    %p169 = scmp.eq.s32.totalorder %s17, 1
    %p170 = por %p168, %p169
    %p172 = scmp.ne.s32.totalorder %s155, %s171
    %p173 = scmp.eq.s32.totalorder %s17, 0
    %p174 = por %p172, %p173
    %p175 = scmp.le.s32.totalorder 1, %s11
    %p176 = scmp.lt.s32.totalorder %s11, 3
    %p177 = pnand %p175, %p176
    %p178 = pneg %p177
    // Predicated region
    $region9: #{run.1} parent=5 // pred_check
      _
    $region10: #{run.1} parent=5 // pred_check_branch
      %180 = sbr.rel (%p177) target = $region12
    $region11: #{run.1} parent=5 // pred_region
      %s181 = ssub.s32 %s11, 1
    $region12: #{run.1} parent=5 // pred_fallthru
      _
    %p182 = scmp.lt.s32.totalorder %s11, 2
    // Predicated region
    $region13: #{run.1} parent=5 // pred_check
      %p183 = pneg %p182
    $region14: #{run.1} parent=5 // pred_check_branch
      %185 = sbr.rel (%p183) target = $region16
    $region15: #{run.1} parent=5 // pred_region
      // Predicated region
      $region17: #{run.1} parent=15 // pred_check
        %p186 = pneg %p31
      $region18: #{run.1} parent=15 // pred_check_branch
        %188 = sbr.rel (%p186) target = $region20
      $region19: #{run.1} parent=15 // pred_region
        %p189 = scmp.lt.s32.totalorder %s11, 1
        %s190 = scalar_select %p189, %s11, 1
        %s191 = smul.addr %s190, 4
        %s192 = scalar_lea.vmem %s0, %s191
      $region20: #{run.1} parent=15 // pred_fallthru
        _
      // Predicated region
      $region21: #{run.1} parent=15 // pred_check
        %p193 = pneg %p57
      $region22: #{run.1} parent=15 // pred_check_branch
        %195 = sbr.rel (%p193) target = $region24
      $region23: #{run.1} parent=15 // pred_region
        %p196 = scmp.lt.s32.totalorder %s11, 1
        %s197 = scalar_select %p196, %s11, 1
        %s198 = smul.addr %s197, 8
        %s199 = scalar_lea.vmem %s1, %s198
      $region24: #{run.1} parent=15 // pred_fallthru
        _
      // Predicated region
      $region25: #{run.1} parent=15 // pred_check
        %p200 = pneg %p83
      $region26: #{run.1} parent=15 // pred_check_branch
        %202 = sbr.rel (%p200) target = $region28
      $region27: #{run.1} parent=15 // pred_region
        %p203 = scmp.lt.s32.totalorder %s11, 1
        %s204 = scalar_select %p203, %s11, 1
        %s205 = smul.addr %s204, 8
        %s206 = scalar_lea.vmem %s2, %s205
      $region28: #{run.1} parent=15 // pred_fallthru
        _
      // Predicated region
      $region29: #{run.1} parent=15 // pred_check
        %p207 = pneg %p109
      $region30: #{run.1} parent=15 // pred_check_branch
        %209 = sbr.rel (%p207) target = $region32
      $region31: #{run.1} parent=15 // pred_region
        %p210 = scmp.lt.s32.totalorder %s11, 1
        %s211 = scalar_select %p210, %s11, 1
        %s212 = scalar_lea.vmem %s3, %s211
      $region32: #{run.1} parent=15 // pred_fallthru
        _
      // Predicated region
      $region33: #{run.1} parent=15 // pred_check
        %p213 = pneg %p135
      $region34: #{run.1} parent=15 // pred_check_branch
        %215 = sbr.rel (%p213) target = $region36
      $region35: #{run.1} parent=15 // pred_region
        %p216 = scmp.lt.s32.totalorder %s11, 1
        %s217 = scalar_select %p216, %s11, 1
        %s218 = scalar_lea.vmem %s4, %s217
      $region36: #{run.1} parent=15 // pred_fallthru
        _
    $region16: #{run.1} parent=5 // pred_fallthru
      _
    %p219 = scmp.le.s32.totalorder 1, %s11
    %p220 = scmp.lt.s32.totalorder %s11, 3
    %p221 = pnand %p219, %p220
    %p222 = pneg %p221
    // Predicated region
    $region37: #{run.1} parent=5 // pred_check
      _
    $region38: #{run.1} parent=5 // pred_check_branch
      %224 = sbr.rel (%p221) target = $region40
    $region39: #{run.1} parent=5 // pred_region
      %s225 = ssub.s32 %s11, 1
      %p226 = scmp.lt.s32.totalorder %s16, 1
      %s227 = scalar_select %p226, %s16, 1
      %s228 = smul.addr %s227, 4
      %s229 = scalar_lea.vmem %s0, %s228
      %p230 = pneg %p37
      %p231 = pneg %p34
      %p232 = scmp.lt.s32.totalorder %s16, 1
      %s233 = scalar_select %p232, %s16, 1
      %s234 = smul.addr %s233, 8
      %s235 = scalar_lea.vmem %s1, %s234
      %p236 = pneg %p63
      %p237 = pneg %p60
      %p238 = scmp.lt.s32.totalorder %s16, 1
      %s239 = scalar_select %p238, %s16, 1
      %s240 = smul.addr %s239, 8
      %s241 = scalar_lea.vmem %s2, %s240
      %p242 = pneg %p89
      %p243 = pneg %p86
      %p244 = scmp.lt.s32.totalorder %s16, 1
      %s245 = scalar_select %p244, %s16, 1
      %s246 = scalar_lea.vmem %s3, %s245
      %p247 = pneg %p115
      %p248 = pneg %p112
      %p249 = scmp.lt.s32.totalorder %s16, 1
      %s250 = scalar_select %p249, %s16, 1
      %s251 = scalar_lea.vmem %s4, %s250
      %p252 = pneg %p141
      %p253 = pneg %p138
      %p254 = pneg %p167
      %p255 = pneg %p164
      %p256 = scmp.lt.s32.totalorder %s16, 1
      %s257 = scalar_select %p256, %s16, 1
      %s258 = scalar_lea.vmem %s5, %s257
      %p259 = scmp.lt.s32.totalorder %s16, 1
      %s260 = scalar_select %p259, %s16, 1
      %s261 = smul.addr %s260, 4
      %s262 = scalar_lea.vmem %s0, %s261
      %p263 = scmp.lt.s32.totalorder %s16, 1
      %s264 = scalar_select %p263, %s16, 1
      %s265 = smul.addr %s264, 8
      %s266 = scalar_lea.vmem %s1, %s265
      %p267 = scmp.lt.s32.totalorder %s16, 1
      %s268 = scalar_select %p267, %s16, 1
      %s269 = smul.addr %s268, 8
      %s270 = scalar_lea.vmem %s2, %s269
      %p271 = scmp.lt.s32.totalorder %s16, 1
      %s272 = scalar_select %p271, %s16, 1
      %s273 = scalar_lea.vmem %s3, %s272
      %p274 = scmp.lt.s32.totalorder %s16, 1
      %s275 = scalar_select %p274, %s16, 1
      %s276 = scalar_lea.vmem %s4, %s275
      %p277 = scmp.lt.s32.totalorder %s16, 1
      %s278 = scalar_select %p277, %s16, 1
      %s279 = scalar_lea.vmem %s5, %s278
      %v280 = vld [vmem:[%s262] sm:$0xf]
      %v281 = vunpack.c.l.bf16 %v280
      %v282 = vld [vmem:[%s266] sm:$0xff]
      %v283 = vld [vmem:[%s276] sm:$0x1]
      %vm284 = vcmask 39936
      %v285 = vsel %vm284, %v281, -inf
      %286 = vmax.xlane.f32.xlu0 %v285
      %v287 = vpop.xlane.xlu0 %286
      %v288 = vsub.f32 %v281, %v287
      %v289 = vmul.f32 %v288, 1.442695
      %v290 = vpow.pop %v289
      %v291 = vsel %vm284, %v290, 0.0
      %292 = vadd.xlane.f32.xlu0 %v291
      %v293 = vpop.xlane.xlu0 %292
      %v294 = vlog2.pop %v293
      %v295 = vmul.f32 %v294, 0.6931472
      %v296 = vadd.f32 %v287, %v295
      %v297 = vlaneseq
      %v298 = vand.u32 %v297, 127
      %299 = vset.pattern.permute.xlu0 0
      %300 = vperm.xlu0 %299, %v282
      %v301 = vpop.permute.xlu0 %300
      %vm302 = vcmp.eq.s32.totalorder %v298, %v301
      %v303 = vsel %vm302, %v281, 0.0
      %v304 = vsel %vm284, %v303, 0.0
      %305 = vadd.xlane.f32.xlu0 %v304
      %v306 = vpop.xlane.xlu0 %305
      %v307 = vsub.f32 %v296, %v306
      %vm308 = vcmp.eq.s32.totalorder %v282, 4
      %v309 = vsel %vm308, 0.1, 1.0
      %v311 = vlaneseq
      %v312 = vshrl.u32 %v311, 7
      %v313 = vsub.s32 0, %v312
      %v314 = vrot.slane %v283, %v313
      %v316 = vmul.f32 %v309, %v314
      %v317 = vmul.f32 %v316, %v307
      %vm318 = vcmask 7168
      %v319 = vsel %vm318, %v317, 0.0
      %320 = vadd.xlane.f32.xlu0 %v319
      %v321 = vpop.xlane.xlu0 %320
      %v322 = vrot.slane %v321, 4
      %v323 = vadd.f32 %v321, %v322
      %v324 = vrot.slane %v323, 2
      %v325 = vadd.f32 %v323, %v324
      %v326 = vrot.slane %v325, 1
      %v327 = vadd.f32 %v325, %v326
      %s328 = vtos %v327
      %v329 = vsel %vm318, %v316, 0.0
      %330 = vadd.xlane.f32.xlu0 %v329
      %v331 = vpop.xlane.xlu0 %330
      %v332 = vrot.slane %v331, 4
      %v333 = vadd.f32 %v331, %v332
      %v334 = vrot.slane %v333, 2
      %v335 = vadd.f32 %v333, %v334
      %v336 = vrot.slane %v335, 1
      %v337 = vadd.f32 %v335, %v336
      %s338 = vtos %v337
      %vm339 = vcmp.lt.s32.totalorder %v298, 4
      %vm340 = vcmp.eq.f32.partialorder %v288, 0.0
      %vm341 = vmand %vm339, %vm340
      %v342 = vsel %vm341, 1.0, 0.0
      %v343 = vsel %vm284, %v342, -inf
      %344 = vmax.xlane.f32.xlu0 %v343
      %v345 = vpop.xlane.xlu0 %344
      %v346 = vrot.slane %v345, 4
      %v347 = vadd.f32 %v345, %v346
      %v348 = vrot.slane %v347, 2
      %v349 = vadd.f32 %v347, %v348
      %v350 = vrot.slane %v349, 1
      %v351 = vadd.f32 %v349, %v350
      %v352 = vld [vmem:[%s273] sm:$0x1]
      %vm353 = vcmask 1040384
      %v354 = vsel %vm353, %v352, 0.0
      %355 = vadd.xlane.f32.xlu0 %v354
      %v356 = vpop.xlane.xlu0 %355
      %v357 = vsub.f32 %v351, %v356
      %v358 = vand.u32 2147483647, %v357
      %v359 = vmul.f32 %v358, %v283
      %v360 = vadd.f32 %v359, 0.0
      %s361 = vtos %v360
      %v362 = vld [vmem:[%s270] sm:$0xff]
      %v364 = vrot.slane %v362, 2
      %v366 = vsub.f32 %v362, %v364
      %v367 = vand.u32 2147483647, %v366
      %v369 = vrot.slane %v367, 4
      %v371 = vadd.f32 %v367, %v369
      %v373 = vlaneseq
      %v374 = vshrl.u32 %v373, 7
      %v375 = vsub.s32 0, %v374
      %v376 = vrot.slane %v352, %v375
      %v378 = vmul.f32 %v371, %v376
      %vm379 = vcmask 1041408
      %v380 = vsel %vm379, %v378, 0.0
      %381 = vadd.xlane.f32.xlu0 %v380
      %v382 = vpop.xlane.xlu0 %381
      %v383 = vrot.slane %v382, 4
      %v384 = vadd.f32 %v382, %v383
      %v385 = vrot.slane %v384, 2
      %v386 = vadd.f32 %v384, %v385
      %v387 = vrot.slane %v386, 1
      %v388 = vadd.f32 %v386, %v387
      %s389 = vtos %v388
      %v390 = vmul.f32 %v362, 0.5
      %v392 = vrot.slane %v390, 4
      %v394 = vsub.f32 %v362, %v392
      %v395 = vadd.f32 %v362, %v392
      %v396 = vsub.f32 %v395, %v394
      %v398 = vrot.slane %v396, 1
      %v400 = vmul.f32 %v396, %v398
      %v402 = vrot.slane %v394, 2
      %v404 = vmax.f32 %v394, %v402
      %v406 = vrot.slane %v395, 2
      %v408 = vmin.f32 %v395, %v406
      %v409 = vsub.f32 %v408, %v404
      %v410 = vmax.f32 %v409, 0.0
      %v412 = vrot.slane %v410, 1
      %v414 = vmul.f32 %v410, %v412
      %v416 = vrot.slane %v400, 2
      %v418 = vadd.f32 %v400, %v416
      %v419 = vsub.f32 %v418, %v414
      %v420 = vrcp.pop %v419
      %v421 = vmul.f32 %v414, %v420
      %v422 = vmin.f32 %v394, %v402
      %v423 = vmax.f32 %v395, %v406
      %v424 = vsub.f32 %v423, %v422
      %v425 = vmax.f32 %v424, 0.0
      %v427 = vrot.slane %v425, 1
      %v429 = vmul.f32 %v425, %v427
      %v430 = vsub.f32 %v429, %v419
      %v431 = vrcp.pop %v429
      %v432 = vmul.f32 %v430, %v431
      %v433 = vsub.f32 %v421, %v432
      %vm434 = vcmp.gt.f32.partialorder %v352, 0.0
      %v435 = vsub.f32 1.0, %v433
      %v436 = vsel %vm434, %v435, 0.0
      %v437 = vsel %vm353, %v436, 0.0
      %438 = vadd.xlane.f32.xlu0 %v437
      %v439 = vpop.xlane.xlu0 %438
      %v440 = vrot.slane %v439, 4
      %v441 = vadd.f32 %v439, %v440
      %v442 = vrot.slane %v441, 2
      %v443 = vadd.f32 %v441, %v442
      %v444 = vrot.slane %v443, 1
      %v445 = vadd.f32 %v443, %v444
      %s446 = vtos %v445
      %vm447 = vcmp.eq.s32.totalorder %v298, 0
      %v448 = vstv %s328
      %v449 = vsel %vm447, %v448, 0.0
      %vm450 = vcmp.eq.s32.totalorder %v298, 1
      %v451 = vstv %s338
      %v452 = vsel %vm450, %v451, 0.0
      %v453 = vadd.f32 %v449, %v452
      %vm454 = vcmp.eq.s32.totalorder %v298, 2
      %v455 = vstv %s361
      %v456 = vsel %vm454, %v455, 0.0
      %v457 = vadd.f32 %v453, %v456
      %vm458 = vcmp.eq.s32.totalorder %v298, 3
      %v459 = vstv %s389
      %v460 = vsel %vm458, %v459, 0.0
      %v461 = vadd.f32 %v457, %v460
      %vm462 = vcmp.eq.s32.totalorder %v298, 4
      %v463 = vstv %s446
      %v464 = vsel %vm462, %v463, 0.0
      %v465 = vadd.f32 %v461, %v464
      %466 = vst [vmem:[%s279] sm:$0x1] %v465
      %p467 = scmp.lt.s32.totalorder %s16, 1
      %s468 = scalar_select %p467, %s16, 1
      %s469 = scalar_lea.vmem %s5, %s468
      // Predicated region
      $region41: #{run.1} parent=39 // pred_check
        %p470 = pneg %p164
      $region42: #{run.1} parent=39 // pred_check_branch
        %472 = sbr.rel (%p470) target = $region44
      $region43: #{run.1} parent=39 // pred_region
        _
      $region44: #{run.1} parent=39 // pred_fallthru
        _
    $region40: #{run.1} parent=5 // pred_fallthru
      _
    %p473 = scmp.le.s32.totalorder 2, %s11
    // Predicated region
    $region45: #{run.1} parent=5 // pred_check
      %p474 = pneg %p473
    $region46: #{run.1} parent=5 // pred_check_branch
      %476 = sbr.rel (%p474) target = $region48
    $region47: #{run.1} parent=5 // pred_region
      %s477 = ssub.s32 %s11, 2
      // Predicated region
      $region49: #{run.1} parent=47 // pred_check
        %p478 = pneg %p170
      $region50: #{run.1} parent=47 // pred_check_branch
        %480 = sbr.rel (%p478) target = $region52
      $region51: #{run.1} parent=47 // pred_region
        %p481 = scmp.lt.s32.totalorder %s17, 1
        %s482 = scalar_select %p481, %s17, 1
        %s483 = scalar_lea.vmem %s5, %s482
      $region52: #{run.1} parent=47 // pred_fallthru
        _
    $region48: #{run.1} parent=5 // pred_fallthru
      _
  $region6: #{run.1} parent=0 // loop_footer
    %s15 = sadd.s32 1, %s11
  $region7: #{run.1} parent=0 // loop_footer_branch
    %10 = sbr.rel target = $region3
  $region8: #{run.1} parent=0 // loop_exit
    _

</llo_original>
